<compile_context>
chip_gen: v5e
topology: v5e:2x2
jax: 0.10.0
libtpu: 0.0.40
codegen_flags: <defaults>
</compile_context>

<pallas_src>
import jax
import jax.numpy as jnp
from jax.experimental import pallas as pl
from jax.experimental.pallas import tpu as pltpu


def _shrink_kernel(lam_ref, x_ref, o_ref):
    # lam_ref: SMEM scalar (shape (1,), f32); x_ref / o_ref: VMEM tiles.
    x = x_ref[...]
    lam = lam_ref[0].astype(x.dtype)
    # Soft-threshold: sign(x) * max(0, |x| - lam)  ==  x - clip(x, -lam, lam)
    # for lam >= 0 (2 elementwise ops instead of 5; no zeros broadcast).
    o_ref[...] = x - jnp.clip(x, -lam, lam)


def _sublane_multiple(dtype):
    # Sub-32-bit dtypes pack along sublanes: keep block sublane counts aligned.
    return {4: 8, 2: 16, 1: 32}.get(jnp.dtype(dtype).itemsize, 8)


def _default_block_bytes():
    # v6e/v7x: ~4 MiB blocks keep the ~0.35 us/step pipeline overhead at ~10%
    # of the DMA time and cost 16 MiB of double-buffered VMEM (< 32 MiB scoped
    # default).  v5e and older: 2 MiB blocks (8 MiB total, half the 16 MiB
    # scoped default) — lower HBM BW means per-step DMA is already long there.
    try:
        kind = jax.devices()[0].device_kind.lower()
    except Exception:
        return 2 << 20
    if any(tag in kind for tag in ("v2", "v3", "v4", "v5")):
        return 2 << 20
    return 4 << 20


def shrinkage_activation(x, lamda, *, target_block_bytes=None):
    """Soft-threshold x by scalar lamda (lamda >= 0) with a Pallas TPU kernel.

    The threshold is applied in x.dtype (for bf16 inputs it is quantized to
    bf16), matching PyTorch's in-dtype behavior.
    """
    orig_shape = x.shape
    dtype = x.dtype
    total = x.size
    if total == 0:
        return x
    if target_block_bytes is None:
        target_block_bytes = _default_block_bytes()

    itemsize = jnp.dtype(dtype).itemsize
    sublane = _sublane_multiple(dtype)
    lam_arr = jnp.asarray(lamda, jnp.float32).reshape(1)
    compiler_params = pltpu.CompilerParams(dimension_semantics=("parallel",))

    # Prefer a lane-dense 2D slab (rows, W): reshape is a free view when W
    # divides the element count, every DMA is one contiguous transfer and all
    # stores are full-width unmasked vst.
    lane_w = None
    for w in (1024, 512, 256, 128):
        if total % w == 0:
            lane_w = w
            break

    if lane_w is not None:
        rows = total // lane_w
        x2 = x.reshape(rows, lane_w)
        row_bytes = lane_w * itemsize
        block_rows = max(sublane,
                         (target_block_bytes // row_bytes) // sublane * sublane)
        # For anything big enough to matter, guarantee >= 4 grid steps so both
        # v7x TensorCores stream and the double-buffer has a steady state.
        if total * itemsize > (512 << 10):
            cap = max(sublane, (rows // 4) // sublane * sublane)
            block_rows = min(block_rows, cap)
        if block_rows >= rows:
            block_rows = rows  # single full-extent block (legal for any rows)
        grid = (pl.cdiv(rows, block_rows),)
        out2 = pl.pallas_call(
            _shrink_kernel,
            out_shape=jax.ShapeDtypeStruct((rows, lane_w), dtype),
            grid=grid,
            in_specs=[
                pl.BlockSpec(memory_space=pltpu.SMEM),                 # lamda
                pl.BlockSpec((block_rows, lane_w), lambda i: (i, 0)),  # x tile
            ],
            out_specs=pl.BlockSpec((block_rows, lane_w), lambda i: (i, 0)),
            compiler_params=compiler_params,
        )(lam_arr, x2)
        return out2.reshape(orig_shape)

    # Ragged fallback (total % 128 != 0): run on the free (1, total) view with
    # a 128-lane-multiple block; Pallas masks the partial final block, so
    # there is no pad/slice HBM round trip (1 read + 1 write total).
    x2 = x.reshape(1, total)
    if total < 128:
        block_lanes = total  # single full-extent block
    else:
        # ~256 KiB of data per block (a (1, N) tile occupies ~8x that in VMEM
        # since only one of 8 sublanes is populated), multiple of 128 lanes.
        block_lanes = max(128, ((256 << 10) // itemsize) // 128 * 128)
        block_lanes = min(block_lanes, (total // 128) * 128)
    grid = (pl.cdiv(total, block_lanes),)
    out2 = pl.pallas_call(
        _shrink_kernel,
        out_shape=jax.ShapeDtypeStruct((1, total), dtype),
        grid=grid,
        in_specs=[
            pl.BlockSpec(memory_space=pltpu.SMEM),
            pl.BlockSpec((1, block_lanes), lambda i: (0, i)),
        ],
        out_specs=pl.BlockSpec((1, block_lanes), lambda i: (0, i)),
        compiler_params=compiler_params,
    )(lam_arr, x2)
    return out2.reshape(orig_shape)


def _reference(x, lamda):
    lam = jnp.asarray(lamda, x.dtype)
    return jnp.sign(x) * jnp.maximum(jnp.zeros_like(x), jnp.abs(x) - lam)


if __name__ == "__main__":
    key = jax.random.PRNGKey(0)
    k1, k2 = jax.random.split(key)
    lamda = 0.3

    # Small NCHW input consistent with a conv-style activation map.
    x = jax.random.normal(k1, (2, 4, 16, 16), dtype=jnp.float32)
    out = jax.block_until_ready(shrinkage_activation(x, lamda))
    ref = _reference(x, lamda)
    assert out.shape == x.shape and out.dtype == x.dtype
    assert jnp.allclose(out, ref, atol=1e-6, rtol=1e-6)

    # Ragged element count (231 % 128 != 0) exercises the masked-boundary path.
    xr = jax.random.normal(k2, (3, 77), dtype=jnp.float32)
    outr = jax.block_until_ready(shrinkage_activation(xr, lamda))
    assert outr.shape == xr.shape and outr.dtype == xr.dtype
    assert jnp.allclose(outr, _reference(xr, lamda), atol=1e-6, rtol=1e-6)

    print("KERNEL_OK")
</pallas_src>

<mosaic_0001>
module attributes {stable_mosaic.version = 11 : i64} {
  func.func @_shrink_kernel(%arg0: i32, %arg1: memref<1xf32, #tpu.memory_space<smem>>, %arg2: memref<2x1024xf32, #tpu.memory_space<vmem>>, %arg3: memref<2x1024xf32, #tpu.memory_space<vmem>>) attributes {dimension_semantics = [#tpu.dimension_semantics<parallel>], iteration_bounds = array<i64: 1>, scalar_prefetch = 0 : i64, scratch_operands = 0 : i64, tpu.core_type = #tpu.core_type<tc>, window_params = [{transform_indices = @transform_0, window_bounds = array<i64: 1>}, {transform_indices = @transform_1, window_bounds = array<i64: 2, 1024>}, {transform_indices = @transform_2, window_bounds = array<i64: 2, 1024>}]} {
    %c0 = arith.constant 0 : index
    %c0_0 = arith.constant 0 : index
    %0 = vector.load %arg2[%c0, %c0_0] : memref<2x1024xf32, #tpu.memory_space<vmem>>, vector<2x1024xf32>
    %c0_1 = arith.constant 0 : index
    %1 = memref.load %arg1[%c0_1] : memref<1xf32, #tpu.memory_space<smem>>
    %cst = arith.constant 0.000000e+00 : f32
    %2 = arith.subf %cst, %1 : f32
    %3 = vector.broadcast %2 : f32 to vector<2x1024xf32>
    %4 = arith.maximumf %3, %0 : vector<2x1024xf32>
    %5 = vector.broadcast %1 : f32 to vector<2x1024xf32>
    %6 = arith.minimumf %5, %4 : vector<2x1024xf32>
    %7 = arith.subf %0, %6 : vector<2x1024xf32>
    %c0_2 = arith.constant 0 : index
    %c0_3 = arith.constant 0 : index
    %8 = vector.load %arg3[%c0_2, %c0_3] : memref<2x1024xf32, #tpu.memory_space<vmem>>, vector<2x1024xf32>
    tpu.vector_store %arg3[%c0_2, %c0_3], %7 {strides = array<i32>} : memref<2x1024xf32, #tpu.memory_space<vmem>>, vector<2x1024xf32>,
    return
  }
  func.func @transform_0(%arg0: i32) -> i32 {
    %c0_i32 = arith.constant 0 : i32
    %c0_i32_0 = arith.constant 0 : i32
    return %c0_i32 : i32
  }
  func.func @transform_1(%arg0: i32) -> (i32, i32) {
    %c0_i32 = arith.constant 0 : i32
    %c0_i32_0 = arith.constant 0 : i32
    return %arg0, %c0_i32 : i32, i32
  }
  func.func @transform_2(%arg0: i32) -> (i32, i32) {
    %c0_i32 = arith.constant 0 : i32
    %c0_i32_0 = arith.constant 0 : i32
    return %arg0, %c0_i32 : i32, i32
  }
}

</mosaic_0001>

<llo_original>
// kernel: tpu_custom_call.1
$region0: #{tpu_custom_call.1}
  #allocation0 [shape = 'u32[]', space=smem, size = 0x4, offset = 0x4, fixed_abs, tag = 'smem constant byte address 0x4 - core index']
  #allocation1 [shape = 'u32[72,128]{1,0:T(1,128)}', space=vmem, size = 0x9000, scoped, tag = 'internal scratch']
  #allocation2 [shape = 'f32[1]{0:T(128)S(6)}', space=smem, size = 0x200, scoped, tag = 'scoped memory for tpu_custom_call.1']
  %s0 = inlined_call_operand.<no memory space> [shape: f32[1], index: 0, kind: input, shape index: {}]
  %s1 = inlined_call_operand.hbm [shape: f32[2,1024], index: 1, kind: input, shape index: {}]
  %s2 = inlined_call_operand.hbm [shape: f32[2,1024], index: 2, kind: output, shape index: {}]
  %s3 = sld [smem:[#allocation0]]
  $region22: #{tpu_custom_call.1} parent=0
    _
  %s5 = ssub.s32 1, %s3
  %s6 = scalar_select 0, %s5, %s3
  %7 = sst [smem:[#allocation2]] %s0
  $region1: #{tpu_custom_call.1} parent=0
    #allocation3 [shape = 'u8[8192]{0}', space=vmem, size = 0x2000, scoped, tag = 'input window, operand 1, single buffered']
    #allocation4 [shape = 's32[1]{0}', space=sflag, size = 0x4, scoped, tag = 'scoped memory for tpu_custom_call.1']
    #allocation5 [shape = 's32[1]{0}', space=sflag, size = 0x4, scoped, tag = 'scoped memory for tpu_custom_call.1']
    #allocation6 [shape = 'u8[8192]{0}', space=vmem, size = 0x2000, scoped, tag = 'output window, operand 0, single buffered']
    %8 = vsyncpa [#allocation4], 0
    %9 = vsyncpa [#allocation5], 0
    // Predicated region
    $region2: #{tpu_custom_call.1} parent=1 // pred_check
      _
    $region3: #{tpu_custom_call.1} parent=1 // pred_check_branch
      %11 = sbr.rel (0) target = $region5
    $region4: #{tpu_custom_call.1} parent=1 // pred_region
      _
    $region5: #{tpu_custom_call.1} parent=1 // pred_fallthru
      _
    // Predicated region
    $region6: #{tpu_custom_call.1} parent=1 // pred_check
      _
    $region7: #{tpu_custom_call.1} parent=1 // pred_check_branch
      %13 = sbr.rel (0) target = $region9
    $region8: #{tpu_custom_call.1} parent=1 // pred_region
      %15 = vsyncadd [#allocation4], 0
      %s17 = sshll.u32 %s1, 4
      %s18 = int_to_ptr.hbm [resolvable:$true] %s17
      %s19 = sshll.u32 [#allocation3], 4
      %s20 = int_to_ptr.vmem [resolvable:$true] %s19
      %22 = dma.hbm_to_vmem [thread:$0]  %s18, 256, %s20, [#allocation4]
    $region9: #{tpu_custom_call.1} parent=1 // pred_fallthru
      _
    // Predicated region
    $region10: #{tpu_custom_call.1} parent=1 // pred_check
      _
    $region11: #{tpu_custom_call.1} parent=1 // pred_check_branch
      %24 = sbr.rel (0) target = $region13
    $region12: #{tpu_custom_call.1} parent=1 // pred_region
      %26 = dma.done [#allocation4], 256
    $region13: #{tpu_custom_call.1} parent=1 // pred_fallthru
      _
    %v27 = vld [vmem:[#allocation3] sm:$0xff]
    %v28 = vld [vmem:[#allocation3 + $0x8] sm:$0xff]
    %s29 = sld [smem:[#allocation2]]
    %s30 = ssub.f32 0.0, %s29
    %v31 = vstv %s30
    %v32 = vmax.f32 %v31, %v27
    %v33 = vmax.f32 %v31, %v28
    %v34 = vstv %s29
    %v35 = vmin.f32 %v34, %v32
    %v36 = vmin.f32 %v34, %v33
    %v37 = vsub.f32 %v27, %v35
    %v38 = vsub.f32 %v28, %v36
    %39 = vst [vmem:[#allocation6] sm:$0xff] %v37
    %40 = vst [vmem:[#allocation6 + $0x8] sm:$0xff] %v38
    // Predicated region
    $region14: #{tpu_custom_call.1} parent=1 // pred_check
      _
    $region15: #{tpu_custom_call.1} parent=1 // pred_check_branch
      %42 = sbr.rel (0) target = $region17
    $region16: #{tpu_custom_call.1} parent=1 // pred_region
      %44 = vsyncadd [#allocation5], 0
      %s46 = sshll.u32 [#allocation6], 4
      %s47 = int_to_ptr.vmem [resolvable:$true] %s46
      %s48 = sshll.u32 %s2, 4
      %s49 = int_to_ptr.hbm [resolvable:$true] %s48
      %51 = dma.vmem_to_hbm [thread:$0]  %s47, 256, %s49, [#allocation5]
    $region17: #{tpu_custom_call.1} parent=1 // pred_fallthru
      _
    // Predicated region
    $region18: #{tpu_custom_call.1} parent=1 // pred_check
      _
    $region19: #{tpu_custom_call.1} parent=1 // pred_check_branch
      %53 = sbr.rel (0) target = $region21
    $region20: #{tpu_custom_call.1} parent=1 // pred_region
      %55 = dma.done [#allocation5], 256
    $region21: #{tpu_custom_call.1} parent=1 // pred_fallthru
      _
    %56 = vsyncpa [#allocation4], 1
    %57 = vsyncpa [#allocation5], 1

</llo_original>
